<compile_context>
chip_gen: v5e
topology: v5e:2x2
jax: 0.10.0
libtpu: 0.0.40
codegen_flags: <defaults>
</compile_context>

<pallas_src>
import functools

import jax
import jax.numpy as jnp
from jax.experimental import pallas as pl
from jax.experimental.pallas import tpu as pltpu


def _focal_loss_kernel(logits_ref, targets_ref, mask_ref, out_ref, acc_ref, *,
                       alpha, gamma, n_valid, tn, tiles_per_split):
    nt = pl.program_id(2)

    @pl.when(nt == 0)
    def _():
        acc_ref[...] = jnp.zeros_like(acc_ref)

    x = logits_ref[0].astype(jnp.float32)            # (tn, Tp)
    t = targets_ref[0].astype(jnp.float32)           # (tn, Tp)
    pos = t > 0.5                                    # binary 0/1 labels

    # z = logit of the "wrong" class, so q = 1 - p_t = sigmoid(z) and
    # BCE-with-logits = -log(p_t) = max(z, 0) + log1p(exp(-|z|)).
    z = jnp.where(pos, -x, x)
    e = jnp.exp(-jnp.abs(x))                         # == exp(-|z|)      (EUP)
    ce = jnp.maximum(z, 0.0) + jnp.log1p(e)          # stable BCE        (EUP log)

    denom = 1.0 + e
    inv = pl.reciprocal(denom, approx=True)          # EUP vrcp (cheap slot)
    inv = inv * (2.0 - denom * inv)                  # one Newton step -> ~f32 exact
    q = jnp.where(z >= 0.0, inv, e * inv)            # q = sigmoid(z) = 1 - p_t

    g = float(gamma)
    if g == int(g) and 0 <= int(g) <= 8:
        gi = int(g)
        mod = jnp.ones_like(q) if gi == 0 else q
        for _ in range(max(gi - 1, 0)):              # gamma=2 -> q*q, no pow
            mod = mod * q
    else:
        mod = jnp.power(q, g)                        # non-integer gamma fallback

    loss = ce * mod
    if alpha >= 0:
        loss = jnp.where(pos, alpha, 1.0 - alpha) * loss

    # Zero rows past the true number of boxes.  Only emitted when a ragged
    # last N-tile actually exists; built from a (tn,1) column iota.
    if n_valid % tn != 0:
        row = jax.lax.broadcasted_iota(jnp.int32, (tn, 1), 0)
        limit = n_valid - (pl.program_id(0) * tiles_per_split + nt) * tn
        loss = jnp.where(row < limit, loss, 0.0)

    # Reduce only the sublane (N) axis per step; lane axis stays in VMEM.
    acc_ref[...] += jnp.sum(loss, axis=0, keepdims=True)       # (1, Tp)

    # Epilogue: text mask + cross-lane reduce once per (split, batch);
    # lane-dense (8,128) store.
    @pl.when(nt == pl.num_programs(2) - 1)
    def _():
        s = jnp.sum(acc_ref[...] * mask_ref[0].astype(jnp.float32))
        out_ref[...] = jnp.broadcast_to(s, out_ref.shape).astype(out_ref.dtype)


def token_sigmoid_focal_loss(logits, targets, text_masks=None, *,
                             alpha, gamma, loss_weight=1.0, block_rows=None):
    """Pallas implementation of TokenSigmoidFocalLoss.forward (version='binary')."""
    assert logits.ndim == 3 and targets.shape == logits.shape
    B, N, T = logits.shape

    if text_masks is None:
        mask2d = jnp.ones((B, T), dtype=jnp.float32)
    else:
        assert text_masks.ndim == 2 and text_masks.shape == (B, T)
        mask2d = (text_masks > 0).astype(jnp.float32)

    # Lane densification: (B, N, T) -> (B, N//k, k*T) is a free row-major
    # reshape.  Use it when T under-fills the 128-lane vreg and N allows it.
    k = 1
    if T < 128 and 128 % T == 0 and N % (128 // T) == 0:
        k = 128 // T
    Np, Tp = N // k, k * T
    logits_k = logits.reshape(B, Np, Tp)
    targets_k = targets.reshape(B, Np, Tp)            # native dtype, no extra cast
    mask3d = jnp.tile(mask2d, (1, k)).reshape(B, 1, Tp)

    # Row-tile size: ~4 MiB f32 logits blocks, multiple of 32 rows; take the
    # whole N' axis in one tile when it fits (compiles out the ragged select).
    if block_rows is None:
        max_block_elems = 1 << 20
        block_rows = max(32, (max_block_elems // max(Tp, 1)) // 32 * 32)
    tn = Np if Np <= block_rows else block_rows
    grid_n = pl.cdiv(Np, tn)

    # Megacore: batch is the natural parallel axis; when B == 1 split the N
    # grid 2-ways (v7x) and sum the per-split results on host.
    n_splits = 2 if (B == 1 and grid_n >= 2 and grid_n % 2 == 0) else 1
    tiles_per_split = grid_n // n_splits

    kernel = functools.partial(
        _focal_loss_kernel, alpha=float(alpha), gamma=float(gamma),
        n_valid=Np, tn=tn, tiles_per_split=tiles_per_split)

    elems = B * N * T
    cost = pl.CostEstimate(
        flops=22 * elems,
        transcendentals=3 * elems,
        bytes_accessed=(logits.size * logits.dtype.itemsize
                        + targets.size * targets.dtype.itemsize
                        + mask3d.size * 4
                        + n_splits * B * 8 * 128 * 4),
    )

    out = pl.pallas_call(
        kernel,
        out_shape=jax.ShapeDtypeStruct((n_splits, B, 8, 128), jnp.float32),
        grid_spec=pltpu.PrefetchScalarGridSpec(
            num_scalar_prefetch=0,
            grid=(n_splits, B, tiles_per_split),
            in_specs=[
                pl.BlockSpec((1, tn, Tp),
                             lambda s, b, n: (b, s * tiles_per_split + n, 0)),
                pl.BlockSpec((1, tn, Tp),
                             lambda s, b, n: (b, s * tiles_per_split + n, 0)),
                pl.BlockSpec((1, 1, Tp), lambda s, b, n: (b, 0, 0)),
            ],
            out_specs=pl.BlockSpec((1, 1, 8, 128), lambda s, b, n: (s, b, 0, 0)),
            scratch_shapes=[pltpu.VMEM((1, Tp), jnp.float32)],
        ),
        compiler_params=pltpu.CompilerParams(
            dimension_semantics=("parallel", "parallel", "arbitrary"),
            vmem_limit_bytes=32 * 1024 * 1024,
        ),
        cost_estimate=cost,
    )(logits_k, targets_k, mask3d)

    # Each (split, batch) sum was broadcast over its (8,128) output block.
    return (jnp.sum(out[:, :, 0, 0]) * loss_weight).astype(jnp.float32)


def _reference(logits, targets, text_masks, alpha, gamma, loss_weight):
    x = logits.astype(jnp.float32)
    t = targets.astype(jnp.float32)
    if text_masks is None:
        m = jnp.ones((x.shape[0], 1, x.shape[2]), jnp.float32)
    else:
        m = (text_masks > 0).astype(jnp.float32)[:, None, :]
    ce = jnp.maximum(x, 0.0) - x * t + jnp.log1p(jnp.exp(-jnp.abs(x)))
    p = jax.nn.sigmoid(x)
    p_t = p * t + (1 - p) * (1 - t)
    loss = ce * (1 - p_t) ** gamma
    if alpha >= 0:
        loss = (alpha * t + (1 - alpha) * (1 - t)) * loss
    return jnp.sum(loss * m) * loss_weight


if __name__ == "__main__":
    # Module "parameters" (from __init__ signature).
    alpha, gamma, loss_weight = 0.25, 2.0, 1.0

    key = jax.random.PRNGKey(0)
    cases = [
        # (B, N, T, use_mask, block_rows)
        (2, 10, 32, True, None),   # ragged full-N tile, no lane densify (10 % 4 != 0)
        (1, 128, 32, True, 8),     # densify 4x -> (1,32,128); forced tiling + v7x N-split
        (2, 20, 64, True, 8),      # densify 2x -> (2,10,128); ragged last N tile
        (2, 16, 40, False, None),  # text_masks=None, T not a divisor of 128
    ]
    for i, (B, N, T, use_mask, br) in enumerate(cases):
        k1, k2, k3, key = jax.random.split(key, 4)
        logits = jax.random.normal(k1, (B, N, T), dtype=jnp.float32)
        targets = (jax.random.uniform(k2, (B, N, T)) > 0.7).astype(jnp.float32)
        if use_mask:
            valid_len = jax.random.randint(k3, (B,), max(1, T // 2), T + 1)
            text_masks = (jnp.arange(T)[None, :] < valid_len[:, None]).astype(jnp.int32)
        else:
            text_masks = None

        loss = token_sigmoid_focal_loss(
            logits, targets, text_masks,
            alpha=alpha, gamma=gamma, loss_weight=loss_weight, block_rows=br)
        loss = jax.block_until_ready(loss)

        ref = _reference(logits, targets, text_masks, alpha, gamma, loss_weight)
        assert jnp.allclose(loss, ref, rtol=1e-5, atol=1e-4), (i, loss, ref)

    print("KERNEL_OK")
</pallas_src>

<mosaic_0001>
module attributes {stable_mosaic.version = 11 : i64} {
  func.func @_focal_loss_kernel(%arg0: i32, %arg1: i32, %arg2: i32, %arg3: memref<1x10x32xf32, #tpu.memory_space<vmem>>, %arg4: memref<1x10x32xf32, #tpu.memory_space<vmem>>, %arg5: memref<1x1x32xf32, #tpu.memory_space<vmem>>, %arg6: memref<1x1x8x128xf32, #tpu.memory_space<vmem>>, %arg7: memref<1x32xf32, #tpu.memory_space<vmem>>) attributes {dimension_semantics = [#tpu.dimension_semantics<parallel>, #tpu.dimension_semantics<parallel>, #tpu.dimension_semantics<arbitrary>], iteration_bounds = array<i64: 1, 2, 1>, scalar_prefetch = 0 : i64, scratch_operands = 1 : i64, tpu.core_type = #tpu.core_type<tc>, window_params = [{transform_indices = @transform_0, window_bounds = array<i64: 1, 10, 32>}, {transform_indices = @transform_1, window_bounds = array<i64: 1, 10, 32>}, {transform_indices = @transform_2, window_bounds = array<i64: 1, 1, 32>}, {transform_indices = @transform_3, window_bounds = array<i64: 1, 1, 8, 128>}]} {
    %c0_i32 = arith.constant 0 : i32
    %0 = arith.cmpi eq, %arg2, %c0_i32 : i32
    %1 = arith.extui %0 : i1 to i32
    %c0_i32_0 = arith.constant 0 : i32
    %2 = arith.cmpi ne, %1, %c0_i32_0 : i32
    scf.if %2 {
      %cst_21 = arith.constant 0.000000e+00 : f32
      %45 = vector.broadcast %cst_21 : f32 to vector<1x32xf32>
      %c0_22 = arith.constant 0 : index
      %c0_23 = arith.constant 0 : index
      %46 = vector.load %arg7[%c0_22, %c0_23] : memref<1x32xf32, #tpu.memory_space<vmem>>, vector<1x32xf32>
      tpu.vector_store %arg7[%c0_22, %c0_23], %45 {strides = array<i32>} : memref<1x32xf32, #tpu.memory_space<vmem>>, vector<1x32xf32>,
    } else {
    }
    %c0 = arith.constant 0 : index
    %c0_1 = arith.constant 0 : index
    %c0_2 = arith.constant 0 : index
    %3 = vector.load %arg3[%c0, %c0_1, %c0_2] : memref<1x10x32xf32, #tpu.memory_space<vmem>>, vector<1x10x32xf32>
    %4 = vector.shape_cast %3 : vector<1x10x32xf32> to vector<10x32xf32>
    %c0_3 = arith.constant 0 : index
    %c0_4 = arith.constant 0 : index
    %c0_5 = arith.constant 0 : index
    %5 = vector.load %arg4[%c0_3, %c0_4, %c0_5] : memref<1x10x32xf32, #tpu.memory_space<vmem>>, vector<1x10x32xf32>
    %6 = vector.shape_cast %5 : vector<1x10x32xf32> to vector<10x32xf32>
    %cst = arith.constant 5.000000e-01 : f32
    %7 = vector.broadcast %cst : f32 to vector<10x32xf32>
    %8 = arith.cmpf ogt, %6, %7 : vector<10x32xf32>
    %cst_6 = arith.constant 0.000000e+00 : f32
    %9 = vector.broadcast %cst_6 : f32 to vector<10x32xf32>
    %10 = arith.subf %9, %4 : vector<10x32xf32>
    %11 = arith.select %8, %10, %4 : vector<10x32xi1>, vector<10x32xf32>
    %12 = math.absf %4 : vector<10x32xf32>
    %cst_7 = arith.constant 0.000000e+00 : f32
    %13 = vector.broadcast %cst_7 : f32 to vector<10x32xf32>
    %14 = arith.subf %13, %12 : vector<10x32xf32>
    %15 = math.exp %14 : vector<10x32xf32>
    %cst_8 = arith.constant 0.000000e+00 : f32
    %16 = vector.broadcast %cst_8 : f32 to vector<10x32xf32>
    %17 = arith.maximumf %11, %16 : vector<10x32xf32>
    %18 = math.log1p %15 : vector<10x32xf32>
    %19 = arith.addf %17, %18 : vector<10x32xf32>
    %cst_9 = arith.constant 1.000000e+00 : f32
    %20 = vector.broadcast %cst_9 : f32 to vector<10x32xf32>
    %21 = arith.addf %20, %15 : vector<10x32xf32>
    %22 = tpu.reciprocal %21 {approx = true} : vector<10x32xf32> -> vector<10x32xf32>
    %23 = arith.mulf %21, %22 : vector<10x32xf32>
    %cst_10 = arith.constant 2.000000e+00 : f32
    %24 = vector.broadcast %cst_10 : f32 to vector<10x32xf32>
    %25 = arith.subf %24, %23 : vector<10x32xf32>
    %26 = arith.mulf %22, %25 : vector<10x32xf32>
    %cst_11 = arith.constant 0.000000e+00 : f32
    %27 = vector.broadcast %cst_11 : f32 to vector<10x32xf32>
    %28 = arith.cmpf oge, %11, %27 : vector<10x32xf32>
    %29 = arith.mulf %15, %26 : vector<10x32xf32>
    %30 = arith.select %28, %26, %29 : vector<10x32xi1>, vector<10x32xf32>
    %31 = arith.mulf %30, %30 : vector<10x32xf32>
    %32 = arith.mulf %19, %31 : vector<10x32xf32>
    %cst_12 = arith.constant 2.500000e-01 : f32
    %cst_13 = arith.constant 7.500000e-01 : f32
    %33 = vector.broadcast %cst_12 : f32 to vector<10x32xf32>
    %34 = vector.broadcast %cst_13 : f32 to vector<10x32xf32>
    %35 = arith.select %8, %33, %34 : vector<10x32xi1>, vector<10x32xf32>
    %36 = arith.mulf %35, %32 : vector<10x32xf32>
    %c0_14 = arith.constant 0 : index
    %c0_15 = arith.constant 0 : index
    %37 = vector.load %arg7[%c0_14, %c0_15] : memref<1x32xf32, #tpu.memory_space<vmem>>, vector<1x32xf32>
    %cst_16 = arith.constant dense<0.000000e+00> : vector<32xf32>
    %38 = vector.multi_reduction <add>, %36, %cst_16 [0] : vector<10x32xf32> to vector<32xf32>
    %39 = vector.shape_cast %38 : vector<32xf32> to vector<1x32xf32>
    %40 = arith.addf %37, %39 : vector<1x32xf32>
    %c0_17 = arith.constant 0 : index
    %c0_18 = arith.constant 0 : index
    %41 = vector.load %arg7[%c0_17, %c0_18] : memref<1x32xf32, #tpu.memory_space<vmem>>, vector<1x32xf32>
    tpu.vector_store %arg7[%c0_17, %c0_18], %40 {strides = array<i32>} : memref<1x32xf32, #tpu.memory_space<vmem>>, vector<1x32xf32>,
    %c0_i32_19 = arith.constant 0 : i32
    %42 = arith.cmpi eq, %arg2, %c0_i32_19 : i32
    %43 = arith.extui %42 : i1 to i32
    %c0_i32_20 = arith.constant 0 : i32
    %44 = arith.cmpi ne, %43, %c0_i32_20 : i32
    scf.if %44 {
      %c0_21 = arith.constant 0 : index
      %c0_22 = arith.constant 0 : index
      %45 = vector.load %arg7[%c0_21, %c0_22] : memref<1x32xf32, #tpu.memory_space<vmem>>, vector<1x32xf32>
      %c0_23 = arith.constant 0 : index
      %c0_24 = arith.constant 0 : index
      %c0_25 = arith.constant 0 : index
      %46 = vector.load %arg5[%c0_23, %c0_24, %c0_25] : memref<1x1x32xf32, #tpu.memory_space<vmem>>, vector<1x1x32xf32>
      %47 = vector.shape_cast %46 : vector<1x1x32xf32> to vector<1x32xf32>
      %48 = arith.mulf %45, %47 : vector<1x32xf32>
      %49 = vector.shape_cast %48 : vector<1x32xf32> to vector<1x1x32xf32>
      %cst_26 = arith.constant dense<0.000000e+00> : vector<1xf32>
      %50 = vector.multi_reduction <add>, %49, %cst_26 [1, 2] : vector<1x1x32xf32> to vector<1xf32>
      %51 = vector.shape_cast %50 : vector<1xf32> to vector<1x1x1xf32>
      %52 = vector.extract %51[0, 0, 0] : f32 from vector<1x1x1xf32>
      %53 = vector.broadcast %52 : f32 to vector<1x1x8x128xf32>
      %c0_27 = arith.constant 0 : index
      %c0_28 = arith.constant 0 : index
      %c0_29 = arith.constant 0 : index
      %c0_30 = arith.constant 0 : index
      %54 = vector.load %arg6[%c0_27, %c0_28, %c0_29, %c0_30] : memref<1x1x8x128xf32, #tpu.memory_space<vmem>>, vector<1x1x8x128xf32>
      tpu.vector_store %arg6[%c0_27, %c0_28, %c0_29, %c0_30], %53 {strides = array<i32>} : memref<1x1x8x128xf32, #tpu.memory_space<vmem>>, vector<1x1x8x128xf32>,
    } else {
    }
    return
  }
  func.func @transform_0(%arg0: i32, %arg1: i32, %arg2: i32) -> (i32, i32, i32) {
    %c1_i32 = arith.constant 1 : i32
    %0 = arith.muli %arg0, %c1_i32 : i32
    %1 = arith.addi %0, %arg2 : i32
    %c0_i32 = arith.constant 0 : i32
    %c0_i32_0 = arith.constant 0 : i32
    return %arg1, %1, %c0_i32 : i32, i32, i32
  }
  func.func @transform_1(%arg0: i32, %arg1: i32, %arg2: i32) -> (i32, i32, i32) {
    %c1_i32 = arith.constant 1 : i32
    %0 = arith.muli %arg0, %c1_i32 : i32
    %1 = arith.addi %0, %arg2 : i32
    %c0_i32 = arith.constant 0 : i32
    %c0_i32_0 = arith.constant 0 : i32
    return %arg1, %1, %c0_i32 : i32, i32, i32
  }
  func.func @transform_2(%arg0: i32, %arg1: i32, %arg2: i32) -> (i32, i32, i32) {
    %c0_i32 = arith.constant 0 : i32
    %c0_i32_0 = arith.constant 0 : i32
    %c0_i32_1 = arith.constant 0 : i32
    return %arg1, %c0_i32, %c0_i32_0 : i32, i32, i32
  }
  func.func @transform_3(%arg0: i32, %arg1: i32, %arg2: i32) -> (i32, i32, i32, i32) {
    %c0_i32 = arith.constant 0 : i32
    %c0_i32_0 = arith.constant 0 : i32
    %c0_i32_1 = arith.constant 0 : i32
    return %arg0, %arg1, %c0_i32, %c0_i32_0 : i32, i32, i32, i32
  }
}

</mosaic_0001>

<llo_original>
// kernel: tpu_custom_call.1
$region0: #{tpu_custom_call.1}
  #allocation0 [shape = 'u32[]', space=smem, size = 0x4, offset = 0x4, fixed_abs, tag = 'smem constant byte address 0x4 - core index']
  #allocation1 [shape = 'u32[72,128]{1,0:T(1,128)}', space=vmem, size = 0x9000, scoped, tag = 'internal scratch']
  #allocation2 [shape = 'f32[1,32]{1,0:T(1,128)}', space=vmem, size = 0x200, scoped, tag = 'scratch operand']
  %s0 = inlined_call_operand.vmem [shape: f32[2,10,32], index: 0, kind: input, shape index: {}]
  %s1 = inlined_call_operand.vmem [shape: f32[2,10,32], index: 1, kind: input, shape index: {}]
  %s2 = inlined_call_operand.vmem [shape: f32[2,1,32], index: 2, kind: input, shape index: {}]
  %s3 = inlined_call_operand.hbm [shape: f32[1,2,8,128], index: 3, kind: output, shape index: {}]
  %s4 = sld [smem:[#allocation0]]
  $region53: #{tpu_custom_call.1} parent=0
    _
  %s6 = ssub.s32 1, %s4
  %s7 = scalar_select 0, %s6, %s4
  $region1: #{tpu_custom_call.1} parent=0
    #allocation3 [shape = 'u8[8192]{0}', space=vmem, size = 0x2000, scoped, tag = 'output window, operand 0']
    #allocation4 [shape = 's32[2]{0}', space=sflag, size = 0x8, scoped, tag = 'scoped memory for tpu_custom_call.1']
    %8 = vsyncpa [#allocation4], 0
    %s9 = scalar_lea.sflag [#allocation4], 1
    %10 = vsyncpa %s9, 0
    loop: start=0, step=1, limit=4
    $region2: #{tpu_custom_call.1} parent=1 // loop_pre_header
      _
    $region3: #{tpu_custom_call.1} parent=1 // loop_header
      %s12 = sphi 0, %s16
      %p13 = scmp.ge.s32.totalorder %s12, 4
      %s19 = sphi 0, %s38
      %s20 = sphi 0, %s34
      %s21 = sphi 0, %s30
      %s22 = sphi 0, %s19
      %s23 = sphi 0, %s20
      %s24 = sphi 0, %s21
      %s25 = sphi 0, %s22
      %s26 = sphi 0, %s23
      %s27 = sphi 0, %s24
      %s45 = sphi 0, %s47
      %s48 = sphi 0, %s45
      %s49 = sphi 0, %s48
      %s65 = sphi 0, %s49
      %s75 = sphi 0, %s77
      %s78 = sphi 0, %s75
      %s79 = sphi 0, %s78
      %s95 = sphi 0, %s79
      %s101 = sphi 0, %s103
      %s104 = sphi 0, %s101
      %s105 = sphi 0, %s104
      %s121 = sphi 0, %s105
      %s129 = sphi 0, %s131
      %s132 = sphi 0, %s129
      %s133 = sphi 0, %s132
      %s149 = sphi 0, %s133
    $region4: #{tpu_custom_call.1} parent=1 // loop_header_branch
      %15 = sbr.rel (%p13) target = $region8
    $region5: #{tpu_custom_call.1} parent=1 // loop_body
      %s17 = ssub.s32 %s12, 1
      %s18 = ssub.s32 %s12, 2
      %s28 = sadd.s32 1, %s21
      %p29 = scmp.ge.s32.totalorder %s28, 1
      %s30 = scalar_select %p29, 0, %s28
      %s31 = sadd.s32 1, %s20
      %s32 = scalar_select %p29, %s31, %s20
      %p33 = scmp.ge.s32.totalorder %s32, 2
      %s34 = scalar_select %p33, 0, %s32
      %s35 = sadd.s32 1, %s19
      %s36 = scalar_select %p33, %s35, %s19
      %p37 = scmp.ge.s32.totalorder %s36, 1
      %s38 = scalar_select %p37, 0, %s36
      %s39 = sadd.s32 %s19, %s21
      %s40 = sadd.s32 %s38, %s30
      %s41 = ssub.s32 %s20, %s34
      %s42 = ssub.s32 %s39, %s40
      %s43 = sor.u32 %s41, %s42
      %p44 = scmp.eq.s32.totalorder %s43, 0
      %s46 = sadd.s32 %s45, 1
      %s47 = scalar_select %p44, %s45, %s46
      %p50 = pneg %p44
      %p51 = scmp.eq.s32.totalorder %s12, 1
      %p52 = por %p50, %p51
      %p53 = scmp.ne.s32.totalorder %s45, %s48
      %p54 = scmp.eq.s32.totalorder %s12, 0
      %p55 = por %p53, %p54
      %p56 = scmp.ne.s32.totalorder %s45, %s48
      %p57 = scmp.eq.s32.totalorder %s17, 1
      %p58 = por %p56, %p57
      %p59 = scmp.ne.s32.totalorder %s48, %s49
      %p60 = scmp.eq.s32.totalorder %s17, 0
      %p61 = por %p59, %p60
      %p62 = scmp.ne.s32.totalorder %s48, %s49
      %p63 = scmp.eq.s32.totalorder %s18, 1
      %p64 = por %p62, %p63
      %p66 = scmp.ne.s32.totalorder %s49, %s65
      %p67 = scmp.eq.s32.totalorder %s18, 0
      %p68 = por %p66, %p67
      %s69 = sadd.s32 %s19, %s21
      %s70 = sadd.s32 %s38, %s30
      %s71 = ssub.s32 %s20, %s34
      %s72 = ssub.s32 %s69, %s70
      %s73 = sor.u32 %s71, %s72
      %p74 = scmp.eq.s32.totalorder %s73, 0
      %s76 = sadd.s32 %s75, 1
      %s77 = scalar_select %p74, %s75, %s76
      %p80 = pneg %p74
      %p81 = scmp.eq.s32.totalorder %s12, 1
      %p82 = por %p80, %p81
      %p83 = scmp.ne.s32.totalorder %s75, %s78
      %p84 = scmp.eq.s32.totalorder %s12, 0
      %p85 = por %p83, %p84
      %p86 = scmp.ne.s32.totalorder %s75, %s78
      %p87 = scmp.eq.s32.totalorder %s17, 1
      %p88 = por %p86, %p87
      %p89 = scmp.ne.s32.totalorder %s78, %s79
      %p90 = scmp.eq.s32.totalorder %s17, 0
      %p91 = por %p89, %p90
      %p92 = scmp.ne.s32.totalorder %s78, %s79
      %p93 = scmp.eq.s32.totalorder %s18, 1
      %p94 = por %p92, %p93
      %p96 = scmp.ne.s32.totalorder %s79, %s95
      %p97 = scmp.eq.s32.totalorder %s18, 0
      %p98 = por %p96, %p97
      %s99 = ssub.s32 %s20, %s34
      %p100 = scmp.eq.s32.totalorder %s99, 0
      %s102 = sadd.s32 %s101, 1
      %s103 = scalar_select %p100, %s101, %s102
      %p106 = pneg %p100
      %p107 = scmp.eq.s32.totalorder %s12, 1
      %p108 = por %p106, %p107
      %p109 = scmp.ne.s32.totalorder %s101, %s104
      %p110 = scmp.eq.s32.totalorder %s12, 0
      %p111 = por %p109, %p110
      %p112 = scmp.ne.s32.totalorder %s101, %s104
      %p113 = scmp.eq.s32.totalorder %s17, 1
      %p114 = por %p112, %p113
      %p115 = scmp.ne.s32.totalorder %s104, %s105
      %p116 = scmp.eq.s32.totalorder %s17, 0
      %p117 = por %p115, %p116
      %p118 = scmp.ne.s32.totalorder %s104, %s105
      %p119 = scmp.eq.s32.totalorder %s18, 1
      %p120 = por %p118, %p119
      %p122 = scmp.ne.s32.totalorder %s105, %s121
      %p123 = scmp.eq.s32.totalorder %s18, 0
      %p124 = por %p122, %p123
      %s125 = ssub.s32 %s19, %s38
      %s126 = ssub.s32 %s20, %s34
      %s127 = sor.u32 %s125, %s126
      %p128 = scmp.eq.s32.totalorder %s127, 0
      %s130 = sadd.s32 %s129, 1
      %s131 = scalar_select %p128, %s129, %s130
      %p134 = pneg %p128
      %p135 = scmp.eq.s32.totalorder %s12, 1
      %p136 = por %p134, %p135
      %p137 = scmp.ne.s32.totalorder %s129, %s132
      %p138 = scmp.eq.s32.totalorder %s12, 0
      %p139 = por %p137, %p138
      %p140 = scmp.ne.s32.totalorder %s129, %s132
      %p141 = scmp.eq.s32.totalorder %s17, 1
      %p142 = por %p140, %p141
      %p143 = scmp.ne.s32.totalorder %s132, %s133
      %p144 = scmp.eq.s32.totalorder %s17, 0
      %p145 = por %p143, %p144
      %p146 = scmp.ne.s32.totalorder %s132, %s133
      %p147 = scmp.eq.s32.totalorder %s18, 1
      %p148 = por %p146, %p147
      %p150 = scmp.ne.s32.totalorder %s133, %s149
      %p151 = scmp.eq.s32.totalorder %s18, 0
      %p152 = por %p150, %p151
      %p153 = scmp.le.s32.totalorder 1, %s12
      %p154 = scmp.lt.s32.totalorder %s12, 3
      %p155 = pnand %p153, %p154
      %p156 = pneg %p155
      // Predicated region
      $region9: #{tpu_custom_call.1} parent=5 // pred_check
        _
      $region10: #{tpu_custom_call.1} parent=5 // pred_check_branch
        %158 = sbr.rel (%p155) target = $region12
      $region11: #{tpu_custom_call.1} parent=5 // pred_region
        %s159 = ssub.s32 %s12, 1
      $region12: #{tpu_custom_call.1} parent=5 // pred_fallthru
        _
      %p160 = scmp.lt.s32.totalorder %s12, 2
      // Predicated region
      $region13: #{tpu_custom_call.1} parent=5 // pred_check
        %p161 = pneg %p160
      $region14: #{tpu_custom_call.1} parent=5 // pred_check_branch
        %163 = sbr.rel (%p161) target = $region16
      $region15: #{tpu_custom_call.1} parent=5 // pred_region
        // Predicated region
        $region17: #{tpu_custom_call.1} parent=15 // pred_check
          %p164 = pneg %p55
        $region18: #{tpu_custom_call.1} parent=15 // pred_check_branch
          %166 = sbr.rel (%p164) target = $region20
        $region19: #{tpu_custom_call.1} parent=15 // pred_region
          %s167 = sadd.s32 %s19, %s21
          %s168 = smul.u32 2, %s167
          %p169 = scmp.lt.s32.totalorder %s20, 1
          %s170 = scalar_select %p169, %s20, 1
          %p171 = scmp.lt.s32.totalorder %s168, 1
          %s172 = scalar_select %p171, %s168, 1
          %s173 = smul.addr %s170, 2
          %s174 = sadd.s32 %s172, %s173
          %s175 = smul.addr %s174, 8
          %s176 = scalar_lea.vmem %s0, %s175
          %s177 = sadd.s32 %s19, %s21
          %s178 = smul.u32 2, %s177
        $region20: #{tpu_custom_call.1} parent=15 // pred_fallthru
          _
        // Predicated region
        $region21: #{tpu_custom_call.1} parent=15 // pred_check
          %p179 = pneg %p85
        $region22: #{tpu_custom_call.1} parent=15 // pred_check_branch
          %181 = sbr.rel (%p179) target = $region24
        $region23: #{tpu_custom_call.1} parent=15 // pred_region
          %s182 = sadd.s32 %s19, %s21
          %s183 = smul.u32 2, %s182
          %p184 = scmp.lt.s32.totalorder %s20, 1
          %s185 = scalar_select %p184, %s20, 1
          %p186 = scmp.lt.s32.totalorder %s183, 1
          %s187 = scalar_select %p186, %s183, 1
          %s188 = smul.addr %s185, 2
          %s189 = sadd.s32 %s187, %s188
          %s190 = smul.addr %s189, 8
          %s191 = scalar_lea.vmem %s1, %s190
          %s192 = sadd.s32 %s19, %s21
          %s193 = smul.u32 2, %s192
        $region24: #{tpu_custom_call.1} parent=15 // pred_fallthru
          _
        // Predicated region
        $region25: #{tpu_custom_call.1} parent=15 // pred_check
          %p194 = pneg %p111
        $region26: #{tpu_custom_call.1} parent=15 // pred_check_branch
          %196 = sbr.rel (%p194) target = $region28
        $region27: #{tpu_custom_call.1} parent=15 // pred_region
          %p197 = scmp.lt.s32.totalorder %s20, 1
          %s198 = scalar_select %p197, %s20, 1
          %s199 = scalar_lea.vmem %s2, %s198
        $region28: #{tpu_custom_call.1} parent=15 // pred_fallthru
          _
      $region16: #{tpu_custom_call.1} parent=5 // pred_fallthru
        _
      %p200 = scmp.le.s32.totalorder 1, %s12
      %p201 = scmp.lt.s32.totalorder %s12, 3
      %p202 = pnand %p200, %p201
      %p203 = pneg %p202
      // Predicated region
      $region29: #{tpu_custom_call.1} parent=5 // pred_check
        _
      $region30: #{tpu_custom_call.1} parent=5 // pred_check_branch
        %205 = sbr.rel (%p202) target = $region32
      $region31: #{tpu_custom_call.1} parent=5 // pred_region
        %s206 = ssub.s32 %s12, 1
        %s207 = sadd.s32 %s22, %s24
        %s208 = smul.u32 2, %s207
        %p209 = scmp.lt.s32.totalorder %s23, 1
        %s210 = scalar_select %p209, %s23, 1
        %p211 = scmp.lt.s32.totalorder %s208, 1
        %s212 = scalar_select %p211, %s208, 1
        %s213 = smul.addr %s210, 2
        %s214 = sadd.s32 %s212, %s213
        %s215 = smul.addr %s214, 8
        %s216 = scalar_lea.vmem %s0, %s215
        %p217 = pneg %p61
        %p218 = pneg %p58
        %s219 = sadd.s32 %s22, %s24
        %s220 = smul.u32 2, %s219
        %p221 = scmp.lt.s32.totalorder %s23, 1
        %s222 = scalar_select %p221, %s23, 1
        %p223 = scmp.lt.s32.totalorder %s220, 1
        %s224 = scalar_select %p223, %s220, 1
        %s225 = smul.addr %s222, 2
        %s226 = sadd.s32 %s224, %s225
        %s227 = smul.addr %s226, 8
        %s228 = scalar_lea.vmem %s1, %s227
        %p229 = pneg %p91
        %p230 = pneg %p88
        %p231 = scmp.lt.s32.totalorder %s23, 1
        %s232 = scalar_select %p231, %s23, 1
        %s233 = scalar_lea.vmem %s2, %s232
        %p234 = pneg %p117
        %p235 = pneg %p114
        %p236 = pneg %p145
        %p237 = pneg %p142
        %s238 = sand.u32 %s132, 1
        %s239 = scalar_lea.sflag [#allocation4], %s238
        %s240 = sand.u32 %s132, 1
        %s241 = smul.addr %s240, 8
        %s242 = scalar_lea.vmem [#allocation3], %s241
        %s243 = sadd.s32 %s22, %s24
        %s244 = smul.u32 2, %s243
        %p245 = scmp.lt.s32.totalorder %s23, 1
        %s246 = scalar_select %p245, %s23, 1
        %p247 = scmp.lt.s32.totalorder %s244, 1
        %s248 = scalar_select %p247, %s244, 1
        %s249 = smul.addr %s246, 2
        %s250 = sadd.s32 %s248, %s249
        %s251 = smul.addr %s250, 8
        %s252 = scalar_lea.vmem %s0, %s251
        %s253 = sadd.s32 %s22, %s24
        %s254 = smul.u32 2, %s253
        %s255 = sadd.s32 %s22, %s24
        %s256 = smul.u32 2, %s255
        %p257 = scmp.lt.s32.totalorder %s23, 1
        %s258 = scalar_select %p257, %s23, 1
        %p259 = scmp.lt.s32.totalorder %s256, 1
        %s260 = scalar_select %p259, %s256, 1
        %s261 = smul.addr %s258, 2
        %s262 = sadd.s32 %s260, %s261
        %s263 = smul.addr %s262, 8
        %s264 = scalar_lea.vmem %s1, %s263
        %s265 = sadd.s32 %s22, %s24
        %s266 = smul.u32 2, %s265
        %p267 = scmp.lt.s32.totalorder %s23, 1
        %s268 = scalar_select %p267, %s23, 1
        %s269 = scalar_lea.vmem %s2, %s268
        %p270 = scmp.eq.s32.totalorder %s24, 0
        // Predicated region
        $region33: #{tpu_custom_call.1} parent=31 // pred_check
          %p271 = pneg %p270
        $region34: #{tpu_custom_call.1} parent=31 // pred_check_branch
          %273 = sbr.rel (%p271) target = $region36
        $region35: #{tpu_custom_call.1} parent=31 // pred_region
          %vm274 = vcmask 253952
          %275 = vst.msk [vmem:[#allocation2] sm:$0x1] %vm274, 0.0
        $region36: #{tpu_custom_call.1} parent=31 // pred_fallthru
          _
        %v276 = vld [vmem:[%s252] sm:$0xff]
        %v277 = vld [vmem:[%s252 + $0x8] sm:$0x3]
        %v278 = vld [vmem:[%s264] sm:$0xff]
        %v279 = vld [vmem:[%s264 + $0x8] sm:$0x3]
        %vm280 = vcmp.gt.f32.partialorder %v278, 0.5
        %vm281 = vcmp.gt.f32.partialorder %v279, 0.5
        %v282 = vsub.f32 0.0, %v276
        %v283 = vsub.f32 0.0, %v277
        %v284 = vsel %vm280, %v282, %v276
        %v285 = vsel %vm281, %v283, %v277
        %v286 = vand.u32 2147483647, %v276
        %v287 = vand.u32 2147483647, %v277
        %v288 = vsub.f32 0.0, %v286
        %v289 = vsub.f32 0.0, %v287
        %v290 = vmul.f32 %v288, 1.442695
        %v291 = vpow.pop %v290
        %v292 = vmul.f32 %v289, 1.442695
        %v293 = vpow.pop %v292
        %v294 = vmax.f32 %v284, 0.0
        %v295 = vmax.f32 %v285, 0.0
        %v296 = vadd.f32 %v291, 1.0
        %v297 = vlog2.pop %v296
        %v298 = vmul.f32 %v297, 0.6931472
        %v299 = vmul.f32 -0.5, %v291
        %v300 = vadd.f32 %v299, 1.0
        %v301 = vmul.f32 %v300, %v291
        %v302 = vand.u32 2147483647, %v291
        %vm303 = vcmp.lt.f32.partialorder %v302, 0.0004427343
        %v304 = vsel %vm303, %v301, %v298
        %v305 = vadd.f32 %v293, 1.0
        %v306 = vlog2.pop %v305
        %v307 = vmul.f32 %v306, 0.6931472
        %v308 = vmul.f32 -0.5, %v293
        %v309 = vadd.f32 %v308, 1.0
        %v310 = vmul.f32 %v309, %v293
        %v311 = vand.u32 2147483647, %v293
        %vm312 = vcmp.lt.f32.partialorder %v311, 0.0004427343
        %v313 = vsel %vm312, %v310, %v307
        %v314 = vadd.f32 %v294, %v304
        %v315 = vadd.f32 %v295, %v313
        %v316 = vadd.f32 %v291, 1.0
        %v317 = vadd.f32 %v293, 1.0
        %v318 = vrcp.pop %v316
        %v319 = vrcp.pop %v317
        %v320 = vmul.f32 %v316, %v318
        %v321 = vmul.f32 %v317, %v319
        %v322 = vsub.f32 2.0, %v320
        %v323 = vsub.f32 2.0, %v321
        %v324 = vmul.f32 %v318, %v322
        %v325 = vmul.f32 %v319, %v323
        %vm326 = vcmp.ge.f32.partialorder %v284, 0.0
        %vm327 = vcmp.ge.f32.partialorder %v285, 0.0
        %v328 = vmul.f32 %v291, %v324
        %v329 = vmul.f32 %v293, %v325
        %v330 = vsel %vm326, %v324, %v328
        %v331 = vsel %vm327, %v325, %v329
        %v332 = vmul.f32 %v330, %v330
        %v333 = vmul.f32 %v331, %v331
        %v334 = vmul.f32 %v314, %v332
        %v335 = vmul.f32 %v315, %v333
        %v336 = vsel %vm280, 0.25, 0.75
        %v337 = vsel %vm281, 0.25, 0.75
        %v338 = vmul.f32 %v336, %v334
        %v339 = vmul.f32 %v337, %v335
        %v340 = vld [vmem:[#allocation2] sm:$0x1]
        %vm341 = vcmask 261120
        %v342 = vsel %vm341, %v338, 0.0
        %vm343 = vcmask 254976
        %v344 = vsel %vm343, %v339, 0.0
        %v345 = vadd.f32 %v342, %v344
        %v346 = vrot.slane %v345, 4
        %v347 = vadd.f32 %v345, %v346
        %v348 = vrot.slane %v347, 2
        %v349 = vadd.f32 %v347, %v348
        %v350 = vrot.slane %v349, 1
        %v351 = vadd.f32 %v349, %v350
        %v352 = vadd.f32 %v340, %v351
        %vm353 = vcmask 253952
        %354 = vst.msk [vmem:[#allocation2] sm:$0x1] %vm353, %v352
        // Predicated region
        $region37: #{tpu_custom_call.1} parent=31 // pred_check
          %p355 = pneg %p270
        $region38: #{tpu_custom_call.1} parent=31 // pred_check_branch
          %357 = sbr.rel (%p355) target = $region40
        $region39: #{tpu_custom_call.1} parent=31 // pred_region
          %v358 = vld [vmem:[#allocation2] sm:$0x1]
          %v359 = vld [vmem:[%s269] sm:$0x1]
          %v360 = vmul.f32 %v358, %v359
          %v361 = vsel %vm353, %v360, 0.0
          %362 = vadd.xlane.f32.xlu0 %v361
          %v363 = vpop.xlane.xlu0 %362
          %v364 = vrot.slane %v363, 4
          %v365 = vadd.f32 %v363, %v364
          %v366 = vrot.slane %v365, 2
          %v367 = vadd.f32 %v365, %v366
          %v368 = vrot.slane %v367, 1
          %v369 = vadd.f32 %v367, %v368
          %s370 = vtos %v369
          %v371 = vstv %s370
          %372 = vst [vmem:[%s242] sm:$0xff] %v371
        $region40: #{tpu_custom_call.1} parent=31 // pred_fallthru
          _
        %s373 = sand.u32 %s132, 1
        %s374 = scalar_lea.sflag [#allocation4], %s373
        %s375 = sand.u32 %s132, 1
        %s376 = smul.addr %s375, 8
        %s377 = scalar_lea.vmem [#allocation3], %s376
        // Predicated region
        $region41: #{tpu_custom_call.1} parent=31 // pred_check
          %p378 = pneg %p142
        $region42: #{tpu_custom_call.1} parent=31 // pred_check_branch
          %380 = sbr.rel (%p378) target = $region44
        $region43: #{tpu_custom_call.1} parent=31 // pred_region
          %382 = vsyncadd %s374, 0
          %s383 = smul.addr %s22, 2
          %s384 = sadd.s32 %s23, %s383
          %s385 = smul.addr %s384, 8
          %s386 = scalar_lea.hbm %s3, %s385
          %s388 = sshll.u32 %s377, 4
          %s389 = int_to_ptr.vmem [resolvable:$true] %s388
          %s390 = sshll.u32 %s386, 4
          %s391 = int_to_ptr.hbm [resolvable:$true] %s390
          %393 = dma.vmem_to_hbm [thread:$0]  %s389, 128, %s391, %s374
        $region44: #{tpu_custom_call.1} parent=31 // pred_fallthru
          _
      $region32: #{tpu_custom_call.1} parent=5 // pred_fallthru
        _
      %p394 = scmp.le.s32.totalorder 2, %s12
      // Predicated region
      $region45: #{tpu_custom_call.1} parent=5 // pred_check
        %p395 = pneg %p394
      $region46: #{tpu_custom_call.1} parent=5 // pred_check_branch
        %397 = sbr.rel (%p395) target = $region48
      $region47: #{tpu_custom_call.1} parent=5 // pred_region
        %s398 = ssub.s32 %s12, 2
        // Predicated region
        $region49: #{tpu_custom_call.1} parent=47 // pred_check
          %p399 = pneg %p148
        $region50: #{tpu_custom_call.1} parent=47 // pred_check_branch
          %401 = sbr.rel (%p399) target = $region52
        $region51: #{tpu_custom_call.1} parent=47 // pred_region
          %s402 = sand.u32 %s133, 1
          %s403 = scalar_lea.sflag [#allocation4], %s402
          %s404 = sand.u32 %s133, 1
          %s405 = smul.addr %s404, 8
          %s406 = scalar_lea.vmem [#allocation3], %s405
          %408 = dma.done %s403, 128
        $region52: #{tpu_custom_call.1} parent=47 // pred_fallthru
          _
      $region48: #{tpu_custom_call.1} parent=5 // pred_fallthru
        _
    $region6: #{tpu_custom_call.1} parent=1 // loop_footer
      %s16 = sadd.s32 1, %s12
    $region7: #{tpu_custom_call.1} parent=1 // loop_footer_branch
      %11 = sbr.rel target = $region3
    $region8: #{tpu_custom_call.1} parent=1 // loop_exit
      _
    %409 = vsyncpa [#allocation4], 1
    %s410 = scalar_lea.sflag [#allocation4], 1
    %411 = vsyncpa %s410, 1

</llo_original>
